<compile_context>
chip_gen: v5e
topology: v5e:2x2
jax: 0.10.0
libtpu: 0.0.40
codegen_flags: <defaults>
</compile_context>

<pallas_src>
import jax
import jax.numpy as jnp
from jax.experimental import pallas as pl
from jax.experimental.pallas import tpu as pltpu


def lstm_kernel(x_ref, wih_ref, whh_ref, b_ref, wlin_ref, blin_ref, out_ref):
    """Single-layer LSTM recurrence + final linear head, fully resident in VMEM/vregs.

    x_ref    : (S, I)      input sequence
    wih_ref  : (I, 4H)     fused input->gate weights (gate order i,f,g,o along lanes)
    whh_ref  : (H, 4H)     fused hidden->gate weights
    b_ref    : (1, 4H)     fused combined bias (b_ih + b_hh)
    wlin_ref : (1, H)      linear head weight (row)
    blin_ref : (1, 1)      linear head bias
    out_ref  : (1, 1)      prediction for the last time step
    """
    S, I = x_ref.shape
    H = whh_ref.shape[0]

    # Fused, lane-dense input projections for every step and every gate in one shot.
    # With I == 1 this is a pure VPU broadcast-multiply ((S,1)*(1,4H)) — a K=1 matmul
    # would be the worst possible MXU shape.  (S,4H)=(8,128) is exactly one f32 vreg.
    if I == 1:
        xg = x_ref[...] * wih_ref[...] + b_ref[...]
    else:
        xg = jnp.dot(x_ref[...], wih_ref[...],
                     preferred_element_type=jnp.float32) + b_ref[...]

    whh = whh_ref[...]                                   # (H, 4H)

    # Zero initial hidden / cell state (matches torch.zeros hidden_cell); state stays
    # in vregs via the Python-level carry — no VMEM store/load on the serial chain.
    h = jnp.zeros((1, H), jnp.float32)
    c = jnp.zeros((1, H), jnp.float32)

    # Fully unrolled recurrence (S is static) so the LLO scheduler can interleave
    # MXU drain / EUP transcendentals / VPU elementwise of adjacent steps.
    for t in range(S):
        # One lane-dense MXU push per step: (1, H) @ (H, 4H) -> (1, 4H).
        z = xg[t:t + 1, :] + jnp.dot(h, whh, preferred_element_type=jnp.float32)

        # Two full-vreg EUP dispatches instead of four tiny (1, H) ones.
        sig = jax.nn.sigmoid(z)
        tnh = jnp.tanh(z)

        i = sig[:, 0 * H:1 * H]
        f = sig[:, 1 * H:2 * H]
        g = tnh[:, 2 * H:3 * H]
        o = sig[:, 3 * H:4 * H]

        c = f * c + i * g
        h = o * jnp.tanh(c)

    # predictions[-1] = Linear(h_S): VPU multiply + lane reduce (skip the MXU for
    # a K=H, N=1 dot).
    out_ref[...] = (jnp.sum(h * wlin_ref[...], axis=-1, keepdims=True)
                    + blin_ref[...])


def lstm_forward(x_seq, wih, whh, b, wlin, blin):
    """x_seq: (S,) float32 1-D sequence -> (1,) prediction (== torch predictions[-1]).

    Takes per-gate parameters (mirroring torch's storage) and fuses them along the
    lane axis in the wrapper (gate order i,f,g,o), so the kernel sees lane-dense
    (., 4H) operands.
    """
    S = x_seq.shape[0]
    I = wih.shape[1]
    H = whh.shape[-1]
    x = x_seq.reshape(S, I).astype(jnp.float32)

    # Fuse the 4 gates along the last (lane) axis.
    wih_all = jnp.transpose(wih, (1, 0, 2)).reshape(I, 4 * H)   # (I, 4H)
    whh_all = jnp.transpose(whh, (1, 0, 2)).reshape(H, 4 * H)   # (H, 4H)
    b_all = jnp.transpose(b, (1, 0, 2)).reshape(1, 4 * H)       # (1, 4H)
    wlin_row = wlin.reshape(1, H)                               # (1, H)

    out = pl.pallas_call(
        lstm_kernel,
        out_shape=jax.ShapeDtypeStruct((1, 1), jnp.float32),
        in_specs=[pl.BlockSpec(memory_space=pltpu.MemorySpace.VMEM)] * 6,
        out_specs=pl.BlockSpec(memory_space=pltpu.MemorySpace.VMEM),
    )(x, wih_all, whh_all, b_all, wlin_row, blin)
    return out.reshape(1)


def lstm_reference(x_seq, wih, whh, b, wlin, blin):
    """Pure-JAX reference mirroring torch nn.LSTM (1 layer, batch=1) + nn.Linear."""
    S = x_seq.shape[0]
    I = wih.shape[1]
    H = whh.shape[-1]
    x = x_seq.reshape(S, I).astype(jnp.float32)
    h = jnp.zeros((1, H), jnp.float32)
    c = jnp.zeros((1, H), jnp.float32)
    for t in range(S):
        xt = x[t:t + 1]
        i = jax.nn.sigmoid(xt @ wih[0] + h @ whh[0] + b[0])
        f = jax.nn.sigmoid(xt @ wih[1] + h @ whh[1] + b[1])
        g = jnp.tanh(xt @ wih[2] + h @ whh[2] + b[2])
        o = jax.nn.sigmoid(xt @ wih[3] + h @ whh[3] + b[3])
        c = f * c + i * g
        h = o * jnp.tanh(c)
    return (h @ wlin + blin).reshape(1)


def init_params(key, input_size, hidden_size, output_size):
    """Deterministic init matching the torch module's parameter shapes.

    torch nn.LSTM stores weight_ih (4H, I), weight_hh (4H, H), bias_ih/bias_hh (4H,)
    with gate order i,f,g,o; we store them per-gate, transposed, biases combined.
    """
    k = 1.0 / jnp.sqrt(hidden_size)
    keys = jax.random.split(key, 6)
    wih = jax.random.uniform(keys[0], (4, input_size, hidden_size),
                             jnp.float32, -k, k)
    whh = jax.random.uniform(keys[1], (4, hidden_size, hidden_size),
                             jnp.float32, -k, k)
    b_ih = jax.random.uniform(keys[2], (4, 1, hidden_size), jnp.float32, -k, k)
    b_hh = jax.random.uniform(keys[3], (4, 1, hidden_size), jnp.float32, -k, k)
    b = b_ih + b_hh
    wlin = jax.random.uniform(keys[4], (hidden_size, output_size),
                              jnp.float32, -k, k)
    blin = jax.random.uniform(keys[5], (1, output_size), jnp.float32, -k, k)
    return wih, whh, b, wlin, blin


if __name__ == "__main__":
    SEQ_LEN = 8       # sequence_length of the forecast dataset window
    INPUT_SIZE = 1    # module default: 1 feature per time step
    HIDDEN = 32       # small hidden_layer_size; 4H = 128 exactly fills the lane axis
    OUTPUT = 1        # module default output_size

    key = jax.random.PRNGKey(0)
    pkey, xkey = jax.random.split(key)
    wih, whh, b, wlin, blin = init_params(pkey, INPUT_SIZE, HIDDEN, OUTPUT)
    x_seq = jax.random.uniform(xkey, (SEQ_LEN,), jnp.float32, -1.0, 1.0)

    pred = jax.block_until_ready(lstm_forward(x_seq, wih, whh, b, wlin, blin))
    ref = lstm_reference(x_seq, wih, whh, b, wlin, blin)

    assert pred.shape == (1,)
    assert jnp.allclose(pred, ref, rtol=1e-5, atol=1e-5), (pred, ref)
    print("KERNEL_OK")
</pallas_src>

<mosaic_0001>
module attributes {stable_mosaic.version = 11 : i64} {
  func.func @lstm_kernel(%arg0: memref<8x1xf32, #tpu.memory_space<vmem>>, %arg1: memref<1x128xf32, #tpu.memory_space<vmem>>, %arg2: memref<32x128xf32, #tpu.memory_space<vmem>>, %arg3: memref<1x128xf32, #tpu.memory_space<vmem>>, %arg4: memref<1x32xf32, #tpu.memory_space<vmem>>, %arg5: memref<1x1xf32, #tpu.memory_space<vmem>>, %arg6: memref<1x1xf32, #tpu.memory_space<vmem>>) attributes {dimension_semantics = [], scalar_prefetch = 0 : i64, scratch_operands = 0 : i64, tpu.core_type = #tpu.core_type<tc>} {
    %c0 = arith.constant 0 : index
    %c0_0 = arith.constant 0 : index
    %0 = vector.load %arg0[%c0, %c0_0] : memref<8x1xf32, #tpu.memory_space<vmem>>, vector<8x1xf32>
    %c0_1 = arith.constant 0 : index
    %c0_2 = arith.constant 0 : index
    %1 = vector.load %arg1[%c0_1, %c0_2] : memref<1x128xf32, #tpu.memory_space<vmem>>, vector<1x128xf32>
    %2 = vector.broadcast %0 : vector<8x1xf32> to vector<8x128xf32>
    %3 = vector.broadcast %1 : vector<1x128xf32> to vector<8x128xf32>
    %4 = arith.mulf %2, %3 : vector<8x128xf32>
    %c0_3 = arith.constant 0 : index
    %c0_4 = arith.constant 0 : index
    %5 = vector.load %arg3[%c0_3, %c0_4] : memref<1x128xf32, #tpu.memory_space<vmem>>, vector<1x128xf32>
    %6 = vector.broadcast %5 : vector<1x128xf32> to vector<8x128xf32>
    %7 = arith.addf %4, %6 : vector<8x128xf32>
    %c0_5 = arith.constant 0 : index
    %c0_6 = arith.constant 0 : index
    %8 = vector.load %arg2[%c0_5, %c0_6] : memref<32x128xf32, #tpu.memory_space<vmem>>, vector<32x128xf32>
    %cst = arith.constant 0.000000e+00 : f32
    %9 = vector.broadcast %cst : f32 to vector<1x32xf32>
    %cst_7 = arith.constant 0.000000e+00 : f32
    %10 = vector.broadcast %cst_7 : f32 to vector<1x32xf32>
    %11 = vector.extract_strided_slice %7 {offsets = [0, 0], sizes = [1, 128], strides = [1, 1]} : vector<8x128xf32> to vector<1x128xf32>
    %cst_8 = arith.constant dense<0.000000e+00> : vector<1x128xf32>
    %12 = tpu.matmul %9, %8, %cst_8 {dimension_numbers = #tpu.dot_dimension_numbers<[1], [0], [0], [1], [0, 0, 1, 1], [], []>} : vector<1x32xf32>, vector<32x128xf32>, vector<1x128xf32> -> vector<1x128xf32>
    %13 = arith.addf %11, %12 : vector<1x128xf32>
    %14 = arith.negf %13 : vector<1x128xf32>
    %15 = math.exp %14 : vector<1x128xf32>
    %cst_9 = arith.constant 1.000000e+00 : f32
    %16 = vector.broadcast %cst_9 : f32 to vector<1x128xf32>
    %17 = arith.addf %16, %15 : vector<1x128xf32>
    %18 = arith.divf %16, %17 : vector<1x128xf32>
    %19 = math.tanh %13 : vector<1x128xf32>
    %20 = vector.extract_strided_slice %18 {offsets = [0, 0], sizes = [1, 32], strides = [1, 1]} : vector<1x128xf32> to vector<1x32xf32>
    %21 = vector.extract_strided_slice %18 {offsets = [0, 32], sizes = [1, 32], strides = [1, 1]} : vector<1x128xf32> to vector<1x32xf32>
    %22 = vector.extract_strided_slice %19 {offsets = [0, 64], sizes = [1, 32], strides = [1, 1]} : vector<1x128xf32> to vector<1x32xf32>
    %23 = vector.extract_strided_slice %18 {offsets = [0, 96], sizes = [1, 32], strides = [1, 1]} : vector<1x128xf32> to vector<1x32xf32>
    %24 = arith.mulf %21, %10 : vector<1x32xf32>
    %25 = arith.mulf %20, %22 : vector<1x32xf32>
    %26 = arith.addf %24, %25 : vector<1x32xf32>
    %27 = math.tanh %26 : vector<1x32xf32>
    %28 = arith.mulf %23, %27 : vector<1x32xf32>
    %29 = vector.extract_strided_slice %7 {offsets = [1, 0], sizes = [1, 128], strides = [1, 1]} : vector<8x128xf32> to vector<1x128xf32>
    %cst_10 = arith.constant dense<0.000000e+00> : vector<1x128xf32>
    %30 = tpu.matmul %28, %8, %cst_10 {dimension_numbers = #tpu.dot_dimension_numbers<[1], [0], [0], [1], [0, 0, 1, 1], [], []>} : vector<1x32xf32>, vector<32x128xf32>, vector<1x128xf32> -> vector<1x128xf32>
    %31 = arith.addf %29, %30 : vector<1x128xf32>
    %32 = arith.negf %31 : vector<1x128xf32>
    %33 = math.exp %32 : vector<1x128xf32>
    %cst_11 = arith.constant 1.000000e+00 : f32
    %34 = vector.broadcast %cst_11 : f32 to vector<1x128xf32>
    %35 = arith.addf %34, %33 : vector<1x128xf32>
    %36 = arith.divf %34, %35 : vector<1x128xf32>
    %37 = math.tanh %31 : vector<1x128xf32>
    %38 = vector.extract_strided_slice %36 {offsets = [0, 0], sizes = [1, 32], strides = [1, 1]} : vector<1x128xf32> to vector<1x32xf32>
    %39 = vector.extract_strided_slice %36 {offsets = [0, 32], sizes = [1, 32], strides = [1, 1]} : vector<1x128xf32> to vector<1x32xf32>
    %40 = vector.extract_strided_slice %37 {offsets = [0, 64], sizes = [1, 32], strides = [1, 1]} : vector<1x128xf32> to vector<1x32xf32>
    %41 = vector.extract_strided_slice %36 {offsets = [0, 96], sizes = [1, 32], strides = [1, 1]} : vector<1x128xf32> to vector<1x32xf32>
    %42 = arith.mulf %39, %26 : vector<1x32xf32>
    %43 = arith.mulf %38, %40 : vector<1x32xf32>
    %44 = arith.addf %42, %43 : vector<1x32xf32>
    %45 = math.tanh %44 : vector<1x32xf32>
    %46 = arith.mulf %41, %45 : vector<1x32xf32>
    %47 = vector.extract_strided_slice %7 {offsets = [2, 0], sizes = [1, 128], strides = [1, 1]} : vector<8x128xf32> to vector<1x128xf32>
    %cst_12 = arith.constant dense<0.000000e+00> : vector<1x128xf32>
    %48 = tpu.matmul %46, %8, %cst_12 {dimension_numbers = #tpu.dot_dimension_numbers<[1], [0], [0], [1], [0, 0, 1, 1], [], []>} : vector<1x32xf32>, vector<32x128xf32>, vector<1x128xf32> -> vector<1x128xf32>
    %49 = arith.addf %47, %48 : vector<1x128xf32>
    %50 = arith.negf %49 : vector<1x128xf32>
    %51 = math.exp %50 : vector<1x128xf32>
    %cst_13 = arith.constant 1.000000e+00 : f32
    %52 = vector.broadcast %cst_13 : f32 to vector<1x128xf32>
    %53 = arith.addf %52, %51 : vector<1x128xf32>
    %54 = arith.divf %52, %53 : vector<1x128xf32>
    %55 = math.tanh %49 : vector<1x128xf32>
    %56 = vector.extract_strided_slice %54 {offsets = [0, 0], sizes = [1, 32], strides = [1, 1]} : vector<1x128xf32> to vector<1x32xf32>
    %57 = vector.extract_strided_slice %54 {offsets = [0, 32], sizes = [1, 32], strides = [1, 1]} : vector<1x128xf32> to vector<1x32xf32>
    %58 = vector.extract_strided_slice %55 {offsets = [0, 64], sizes = [1, 32], strides = [1, 1]} : vector<1x128xf32> to vector<1x32xf32>
    %59 = vector.extract_strided_slice %54 {offsets = [0, 96], sizes = [1, 32], strides = [1, 1]} : vector<1x128xf32> to vector<1x32xf32>
    %60 = arith.mulf %57, %44 : vector<1x32xf32>
    %61 = arith.mulf %56, %58 : vector<1x32xf32>
    %62 = arith.addf %60, %61 : vector<1x32xf32>
    %63 = math.tanh %62 : vector<1x32xf32>
    %64 = arith.mulf %59, %63 : vector<1x32xf32>
    %65 = vector.extract_strided_slice %7 {offsets = [3, 0], sizes = [1, 128], strides = [1, 1]} : vector<8x128xf32> to vector<1x128xf32>
    %cst_14 = arith.constant dense<0.000000e+00> : vector<1x128xf32>
    %66 = tpu.matmul %64, %8, %cst_14 {dimension_numbers = #tpu.dot_dimension_numbers<[1], [0], [0], [1], [0, 0, 1, 1], [], []>} : vector<1x32xf32>, vector<32x128xf32>, vector<1x128xf32> -> vector<1x128xf32>
    %67 = arith.addf %65, %66 : vector<1x128xf32>
    %68 = arith.negf %67 : vector<1x128xf32>
    %69 = math.exp %68 : vector<1x128xf32>
    %cst_15 = arith.constant 1.000000e+00 : f32
    %70 = vector.broadcast %cst_15 : f32 to vector<1x128xf32>
    %71 = arith.addf %70, %69 : vector<1x128xf32>
    %72 = arith.divf %70, %71 : vector<1x128xf32>
    %73 = math.tanh %67 : vector<1x128xf32>
    %74 = vector.extract_strided_slice %72 {offsets = [0, 0], sizes = [1, 32], strides = [1, 1]} : vector<1x128xf32> to vector<1x32xf32>
    %75 = vector.extract_strided_slice %72 {offsets = [0, 32], sizes = [1, 32], strides = [1, 1]} : vector<1x128xf32> to vector<1x32xf32>
    %76 = vector.extract_strided_slice %73 {offsets = [0, 64], sizes = [1, 32], strides = [1, 1]} : vector<1x128xf32> to vector<1x32xf32>
    %77 = vector.extract_strided_slice %72 {offsets = [0, 96], sizes = [1, 32], strides = [1, 1]} : vector<1x128xf32> to vector<1x32xf32>
    %78 = arith.mulf %75, %62 : vector<1x32xf32>
    %79 = arith.mulf %74, %76 : vector<1x32xf32>
    %80 = arith.addf %78, %79 : vector<1x32xf32>
    %81 = math.tanh %80 : vector<1x32xf32>
    %82 = arith.mulf %77, %81 : vector<1x32xf32>
    %83 = vector.extract_strided_slice %7 {offsets = [4, 0], sizes = [1, 128], strides = [1, 1]} : vector<8x128xf32> to vector<1x128xf32>
    %cst_16 = arith.constant dense<0.000000e+00> : vector<1x128xf32>
    %84 = tpu.matmul %82, %8, %cst_16 {dimension_numbers = #tpu.dot_dimension_numbers<[1], [0], [0], [1], [0, 0, 1, 1], [], []>} : vector<1x32xf32>, vector<32x128xf32>, vector<1x128xf32> -> vector<1x128xf32>
    %85 = arith.addf %83, %84 : vector<1x128xf32>
    %86 = arith.negf %85 : vector<1x128xf32>
    %87 = math.exp %86 : vector<1x128xf32>
    %cst_17 = arith.constant 1.000000e+00 : f32
    %88 = vector.broadcast %cst_17 : f32 to vector<1x128xf32>
    %89 = arith.addf %88, %87 : vector<1x128xf32>
    %90 = arith.divf %88, %89 : vector<1x128xf32>
    %91 = math.tanh %85 : vector<1x128xf32>
    %92 = vector.extract_strided_slice %90 {offsets = [0, 0], sizes = [1, 32], strides = [1, 1]} : vector<1x128xf32> to vector<1x32xf32>
    %93 = vector.extract_strided_slice %90 {offsets = [0, 32], sizes = [1, 32], strides = [1, 1]} : vector<1x128xf32> to vector<1x32xf32>
    %94 = vector.extract_strided_slice %91 {offsets = [0, 64], sizes = [1, 32], strides = [1, 1]} : vector<1x128xf32> to vector<1x32xf32>
    %95 = vector.extract_strided_slice %90 {offsets = [0, 96], sizes = [1, 32], strides = [1, 1]} : vector<1x128xf32> to vector<1x32xf32>
    %96 = arith.mulf %93, %80 : vector<1x32xf32>
    %97 = arith.mulf %92, %94 : vector<1x32xf32>
    %98 = arith.addf %96, %97 : vector<1x32xf32>
    %99 = math.tanh %98 : vector<1x32xf32>
    %100 = arith.mulf %95, %99 : vector<1x32xf32>
    %101 = vector.extract_strided_slice %7 {offsets = [5, 0], sizes = [1, 128], strides = [1, 1]} : vector<8x128xf32> to vector<1x128xf32>
    %cst_18 = arith.constant dense<0.000000e+00> : vector<1x128xf32>
    %102 = tpu.matmul %100, %8, %cst_18 {dimension_numbers = #tpu.dot_dimension_numbers<[1], [0], [0], [1], [0, 0, 1, 1], [], []>} : vector<1x32xf32>, vector<32x128xf32>, vector<1x128xf32> -> vector<1x128xf32>
    %103 = arith.addf %101, %102 : vector<1x128xf32>
    %104 = arith.negf %103 : vector<1x128xf32>
    %105 = math.exp %104 : vector<1x128xf32>
    %cst_19 = arith.constant 1.000000e+00 : f32
    %106 = vector.broadcast %cst_19 : f32 to vector<1x128xf32>
    %107 = arith.addf %106, %105 : vector<1x128xf32>
    %108 = arith.divf %106, %107 : vector<1x128xf32>
    %109 = math.tanh %103 : vector<1x128xf32>
    %110 = vector.extract_strided_slice %108 {offsets = [0, 0], sizes = [1, 32], strides = [1, 1]} : vector<1x128xf32> to vector<1x32xf32>
    %111 = vector.extract_strided_slice %108 {offsets = [0, 32], sizes = [1, 32], strides = [1, 1]} : vector<1x128xf32> to vector<1x32xf32>
    %112 = vector.extract_strided_slice %109 {offsets = [0, 64], sizes = [1, 32], strides = [1, 1]} : vector<1x128xf32> to vector<1x32xf32>
    %113 = vector.extract_strided_slice %108 {offsets = [0, 96], sizes = [1, 32], strides = [1, 1]} : vector<1x128xf32> to vector<1x32xf32>
    %114 = arith.mulf %111, %98 : vector<1x32xf32>
    %115 = arith.mulf %110, %112 : vector<1x32xf32>
    %116 = arith.addf %114, %115 : vector<1x32xf32>
    %117 = math.tanh %116 : vector<1x32xf32>
    %118 = arith.mulf %113, %117 : vector<1x32xf32>
    %119 = vector.extract_strided_slice %7 {offsets = [6, 0], sizes = [1, 128], strides = [1, 1]} : vector<8x128xf32> to vector<1x128xf32>
    %cst_20 = arith.constant dense<0.000000e+00> : vector<1x128xf32>
    %120 = tpu.matmul %118, %8, %cst_20 {dimension_numbers = #tpu.dot_dimension_numbers<[1], [0], [0], [1], [0, 0, 1, 1], [], []>} : vector<1x32xf32>, vector<32x128xf32>, vector<1x128xf32> -> vector<1x128xf32>
    %121 = arith.addf %119, %120 : vector<1x128xf32>
    %122 = arith.negf %121 : vector<1x128xf32>
    %123 = math.exp %122 : vector<1x128xf32>
    %cst_21 = arith.constant 1.000000e+00 : f32
    %124 = vector.broadcast %cst_21 : f32 to vector<1x128xf32>
    %125 = arith.addf %124, %123 : vector<1x128xf32>
    %126 = arith.divf %124, %125 : vector<1x128xf32>
    %127 = math.tanh %121 : vector<1x128xf32>
    %128 = vector.extract_strided_slice %126 {offsets = [0, 0], sizes = [1, 32], strides = [1, 1]} : vector<1x128xf32> to vector<1x32xf32>
    %129 = vector.extract_strided_slice %126 {offsets = [0, 32], sizes = [1, 32], strides = [1, 1]} : vector<1x128xf32> to vector<1x32xf32>
    %130 = vector.extract_strided_slice %127 {offsets = [0, 64], sizes = [1, 32], strides = [1, 1]} : vector<1x128xf32> to vector<1x32xf32>
    %131 = vector.extract_strided_slice %126 {offsets = [0, 96], sizes = [1, 32], strides = [1, 1]} : vector<1x128xf32> to vector<1x32xf32>
    %132 = arith.mulf %129, %116 : vector<1x32xf32>
    %133 = arith.mulf %128, %130 : vector<1x32xf32>
    %134 = arith.addf %132, %133 : vector<1x32xf32>
    %135 = math.tanh %134 : vector<1x32xf32>
    %136 = arith.mulf %131, %135 : vector<1x32xf32>
    %137 = vector.extract_strided_slice %7 {offsets = [7, 0], sizes = [1, 128], strides = [1, 1]} : vector<8x128xf32> to vector<1x128xf32>
    %cst_22 = arith.constant dense<0.000000e+00> : vector<1x128xf32>
    %138 = tpu.matmul %136, %8, %cst_22 {dimension_numbers = #tpu.dot_dimension_numbers<[1], [0], [0], [1], [0, 0, 1, 1], [], []>} : vector<1x32xf32>, vector<32x128xf32>, vector<1x128xf32> -> vector<1x128xf32>
    %139 = arith.addf %137, %138 : vector<1x128xf32>
    %140 = arith.negf %139 : vector<1x128xf32>
    %141 = math.exp %140 : vector<1x128xf32>
    %cst_23 = arith.constant 1.000000e+00 : f32
    %142 = vector.broadcast %cst_23 : f32 to vector<1x128xf32>
    %143 = arith.addf %142, %141 : vector<1x128xf32>
    %144 = arith.divf %142, %143 : vector<1x128xf32>
    %145 = math.tanh %139 : vector<1x128xf32>
    %146 = vector.extract_strided_slice %144 {offsets = [0, 0], sizes = [1, 32], strides = [1, 1]} : vector<1x128xf32> to vector<1x32xf32>
    %147 = vector.extract_strided_slice %144 {offsets = [0, 32], sizes = [1, 32], strides = [1, 1]} : vector<1x128xf32> to vector<1x32xf32>
    %148 = vector.extract_strided_slice %145 {offsets = [0, 64], sizes = [1, 32], strides = [1, 1]} : vector<1x128xf32> to vector<1x32xf32>
    %149 = vector.extract_strided_slice %144 {offsets = [0, 96], sizes = [1, 32], strides = [1, 1]} : vector<1x128xf32> to vector<1x32xf32>
    %150 = arith.mulf %147, %134 : vector<1x32xf32>
    %151 = arith.mulf %146, %148 : vector<1x32xf32>
    %152 = arith.addf %150, %151 : vector<1x32xf32>
    %153 = math.tanh %152 : vector<1x32xf32>
    %154 = arith.mulf %149, %153 : vector<1x32xf32>
    %c0_24 = arith.constant 0 : index
    %c0_25 = arith.constant 0 : index
    %155 = vector.load %arg4[%c0_24, %c0_25] : memref<1x32xf32, #tpu.memory_space<vmem>>, vector<1x32xf32>
    %156 = arith.mulf %154, %155 : vector<1x32xf32>
    %cst_26 = arith.constant dense<0.000000e+00> : vector<1xf32>
    %157 = vector.multi_reduction <add>, %156, %cst_26 [1] : vector<1x32xf32> to vector<1xf32>
    %158 = vector.shape_cast %157 : vector<1xf32> to vector<1x1xf32>
    %c0_27 = arith.constant 0 : index
    %c0_28 = arith.constant 0 : index
    %159 = vector.load %arg5[%c0_27, %c0_28] : memref<1x1xf32, #tpu.memory_space<vmem>>, vector<1x1xf32>
    %160 = arith.addf %158, %159 : vector<1x1xf32>
    %c0_29 = arith.constant 0 : index
    %c0_30 = arith.constant 0 : index
    %161 = vector.load %arg6[%c0_29, %c0_30] : memref<1x1xf32, #tpu.memory_space<vmem>>, vector<1x1xf32>
    tpu.vector_store %arg6[%c0_29, %c0_30], %160 {strides = array<i32>} : memref<1x1xf32, #tpu.memory_space<vmem>>, vector<1x1xf32>,
    return
  }
}

</mosaic_0001>

<llo_original>
// kernel: tpu_custom_call.1
$region0: #{tpu_custom_call.1}
  #allocation0 [shape = 'u32[]', space=smem, size = 0x4, offset = 0x4, fixed_abs, tag = 'smem constant byte address 0x4 - core index']
  #allocation1 [shape = 'u32[72,128]{1,0:T(1,128)}', space=vmem, size = 0x9000, scoped, tag = 'internal scratch']
  #allocation2 [shape = 'f32[1,1]{1,0:T(1,128)S(1)}', space=vmem, size = 0x200, scoped, tag = 'scoped memory for tpu_custom_call.1']
  %s0 = inlined_call_operand.vmem [shape: f32[8,1], index: 0, kind: input, shape index: {}]
  %s1 = inlined_call_operand.vmem [shape: f32[1,128], index: 1, kind: input, shape index: {}]
  %s2 = inlined_call_operand.hbm [shape: f32[32,128], index: 2, kind: input, shape index: {}]
  %s3 = inlined_call_operand.vmem [shape: f32[1,128], index: 3, kind: input, shape index: {}]
  %s4 = inlined_call_operand.vmem [shape: f32[1,32], index: 4, kind: input, shape index: {}]
  %s5 = inlined_call_operand.<no memory space> [shape: f32[1,1], index: 5, kind: input, shape index: {}]
  %s6 = inlined_call_operand.hbm [shape: f32[1,1], index: 6, kind: output, shape index: {}]
  %s7 = sld [smem:[#allocation0]]
  $region38: #{tpu_custom_call.1} parent=0
    _
  %s9 = ssub.s32 1, %s7
  %s10 = scalar_select 0, %s9, %s7
  %v11 = vstv %s5
  %12 = vst [vmem:[#allocation2] sm:$0x1] %v11
  $region1: #{tpu_custom_call.1} parent=0
    #allocation3 [shape = 'u8[16384]{0}', space=vmem, size = 0x4000, scoped, tag = 'input window, operand 2, single buffered']
    #allocation4 [shape = 's32[1]{0}', space=sflag, size = 0x4, scoped, tag = 'scoped memory for tpu_custom_call.1']
    #allocation5 [shape = 's32[1]{0}', space=sflag, size = 0x4, scoped, tag = 'scoped memory for tpu_custom_call.1']
    #allocation6 [shape = 'u8[512]{0}', space=vmem, size = 0x400, scoped, tag = 'output window, operand 0, single buffered']
    %13 = vsyncpa [#allocation4], 0
    %14 = vsyncpa [#allocation5], 0
    // Predicated region
    $region2: #{tpu_custom_call.1} parent=1 // pred_check
      _
    $region3: #{tpu_custom_call.1} parent=1 // pred_check_branch
      %16 = sbr.rel (0) target = $region5
    $region4: #{tpu_custom_call.1} parent=1 // pred_region
      _
    $region5: #{tpu_custom_call.1} parent=1 // pred_fallthru
      _
    // Predicated region
    $region6: #{tpu_custom_call.1} parent=1 // pred_check
      _
    $region7: #{tpu_custom_call.1} parent=1 // pred_check_branch
      %18 = sbr.rel (0) target = $region9
    $region8: #{tpu_custom_call.1} parent=1 // pred_region
      _
    $region9: #{tpu_custom_call.1} parent=1 // pred_fallthru
      _
    // Predicated region
    $region10: #{tpu_custom_call.1} parent=1 // pred_check
      _
    $region11: #{tpu_custom_call.1} parent=1 // pred_check_branch
      %20 = sbr.rel (0) target = $region13
    $region12: #{tpu_custom_call.1} parent=1 // pred_region
      %22 = vsyncadd [#allocation4], 0
      %s23 = sshll.u32 %s2, 4
      %s24 = int_to_ptr.hbm [resolvable:$true] %s23
      %s25 = sshll.u32 [#allocation3], 4
      %s26 = int_to_ptr.vmem [resolvable:$true] %s25
      %31 = dma.hbm_to_vmem [thread:$0]  %s24, 512, %s26, [#allocation4], 128, 128, 8
    $region13: #{tpu_custom_call.1} parent=1 // pred_fallthru
      _
    // Predicated region
    $region14: #{tpu_custom_call.1} parent=1 // pred_check
      _
    $region15: #{tpu_custom_call.1} parent=1 // pred_check_branch
      %33 = sbr.rel (0) target = $region17
    $region16: #{tpu_custom_call.1} parent=1 // pred_region
      _
    $region17: #{tpu_custom_call.1} parent=1 // pred_fallthru
      _
    // Predicated region
    $region18: #{tpu_custom_call.1} parent=1 // pred_check
      _
    $region19: #{tpu_custom_call.1} parent=1 // pred_check_branch
      %35 = sbr.rel (0) target = $region21
    $region20: #{tpu_custom_call.1} parent=1 // pred_region
      _
    $region21: #{tpu_custom_call.1} parent=1 // pred_fallthru
      _
    // Predicated region
    $region22: #{tpu_custom_call.1} parent=1 // pred_check
      _
    $region23: #{tpu_custom_call.1} parent=1 // pred_check_branch
      %37 = sbr.rel (0) target = $region25
    $region24: #{tpu_custom_call.1} parent=1 // pred_region
      _
    $region25: #{tpu_custom_call.1} parent=1 // pred_fallthru
      _
    // Predicated region
    $region26: #{tpu_custom_call.1} parent=1 // pred_check
      _
    $region27: #{tpu_custom_call.1} parent=1 // pred_check_branch
      %39 = sbr.rel (0) target = $region29
    $region28: #{tpu_custom_call.1} parent=1 // pred_region
      %41 = dma.done [#allocation4], 512
    $region29: #{tpu_custom_call.1} parent=1 // pred_fallthru
      _
    %v42 = vld [vmem:[%s0] sm:$0xff]
    %v43 = vld [vmem:[%s1] sm:$0x1]
    %45 = vset.pattern.permute.xlu0 0
    %46 = vperm.xlu0 %45, %v42
    %v47 = vpop.permute.xlu0 %46
    %v50 = vperm.slane %v43, 0
    %v52 = vmul.f32 %v47, %v50
    %v53 = vld [vmem:[%s3] sm:$0x1]
    %v55 = vperm.slane %v53, 0
    %v57 = vadd.f32 %v52, %v55
    %v58 = vld [vmem:[#allocation3] sm:$0xff]
    %v59 = vld [vmem:[#allocation3 + $0x8] sm:$0xff]
    %v60 = vld [vmem:[#allocation3 + $0x10] sm:$0xff]
    %v61 = vld [vmem:[#allocation3 + $0x18] sm:$0xff]
    %vm62 = vcmask 261120
    %v64 = vsel %vm62, 0.0, 0
    %66 = vmatpush.msra.mxu0 0.0
    %67 = vmatpush.msra.mxu0 0.0
    %68 = vmatpush.msra.mxu0 0.0
    %69 = vmatpush.msra.mxu0 0.0
    %70 = vmatpush.msra.mxu0 0.0
    %71 = vmatpush.msra.mxu0 0.0
    %72 = vmatpush.msra.mxu0 0.0
    %73 = vmatpush.msra.mxu0 0.0
    %74 = vmatpush.msra.mxu0 0.0
    %75 = vmatpush.msra.mxu0 0.0
    %76 = vmatpush.msra.mxu0 0.0
    %77 = vmatpush.msra.mxu0 0.0
    %78 = vmatpush.msra.mxu0 %v61
    %79 = vmatpush.msra.mxu0 %v60
    %80 = vmatpush.msra.mxu0 %v59
    %81 = vmatpush.msra.mxu0 %v58
    %82 = vmatmul.f32.gmra.mxu0 %v64
    %v83 = vpop.f32.mrf.mxu0
    %v84 = vadd.f32 0.0, %v83
    %85 = vdwg.mxu0
    %v86 = vadd.f32 %v57, %v84
    %v87 = vxor.u32 %v86, 2147483648
    %v88 = vmul.f32 %v87, 1.442695
    %v89 = vpow.pop %v88
    %v90 = vadd.f32 %v89, 1.0
    %v91 = vrcp.pop %v90
    %v92 = vmul.f32 %v90, %v91
    %v93 = vsub.f32 1.0, %v92
    %v94 = vmul.f32 %v91, %v93
    %v95 = vadd.f32 %v91, %v94
    %vm96 = vweird.f32 %v90
    %vm97 = vweird.f32 %v91
    %vm98 = vmor %vm96, %vm97
    %v99 = vsel %vm98, %v91, %v95
    %v100 = vand.u32 2147483647, %v90
    %vm101 = vcmp.eq.f32.partialorder %v100, 8.507059e+37
    %v102 = vand.u32 %v90, 2147483648
    %v103 = vor.u32 1.1754944e-38, %v102
    %v104 = vsel %vm101, %v103, %v99
    %v105 = vmul.f32 1.0, %v104
    %v106 = vtanh.pop %v86
    %v107 = vmul.f32 %v105, 0.0
    %109 = vrot.lane.b32.xlu0 %v106, 64
    %v110 = vpop.permute.xlu0 %109
    %v112 = vmul.f32 %v105, %v110
    %114 = vrot.lane.b32.xlu0 %v112, 32
    %v115 = vpop.permute.xlu0 %114
    %v117 = vadd.f32 %v107, %v115
    %v118 = vtanh.pop %v117
    %120 = vrot.lane.b32.xlu0 %v118, 64
    %v121 = vpop.permute.xlu0 %120
    %v123 = vmul.f32 %v105, %v121
    %125 = vrot.lane.b32.xlu0 %v123, 32
    %v126 = vpop.permute.xlu0 %125
    %v127 = vsel %vm62, %v126, 0
    %129 = vmatpush.msra.mxu0 0.0
    %130 = vmatpush.msra.mxu0 0.0
    %131 = vmatpush.msra.mxu0 0.0
    %132 = vmatpush.msra.mxu0 0.0
    %133 = vmatpush.msra.mxu0 0.0
    %134 = vmatpush.msra.mxu0 0.0
    %135 = vmatpush.msra.mxu0 0.0
    %136 = vmatpush.msra.mxu0 0.0
    %137 = vmatpush.msra.mxu0 0.0
    %138 = vmatpush.msra.mxu0 0.0
    %139 = vmatpush.msra.mxu0 0.0
    %140 = vmatpush.msra.mxu0 0.0
    %141 = vmatpush.msra.mxu0 %v61
    %142 = vmatpush.msra.mxu0 %v60
    %143 = vmatpush.msra.mxu0 %v59
    %144 = vmatpush.msra.mxu0 %v58
    %145 = vmatmul.f32.gmra.mxu0 %v127
    %v146 = vpop.f32.mrf.mxu0
    %v147 = vadd.f32 0.0, %v146
    %148 = vdwg.mxu0
    %v150 = vrot.slane %v147, 7
    %v152 = vadd.f32 %v57, %v150
    %v153 = vxor.u32 %v152, 2147483648
    %v154 = vmul.f32 %v153, 1.442695
    %v155 = vpow.pop %v154
    %v156 = vadd.f32 %v155, 1.0
    %v157 = vrcp.pop %v156
    %v158 = vmul.f32 %v156, %v157
    %v159 = vsub.f32 1.0, %v158
    %v160 = vmul.f32 %v157, %v159
    %v161 = vadd.f32 %v157, %v160
    %vm162 = vweird.f32 %v156
    %vm163 = vweird.f32 %v157
    %vm164 = vmor %vm162, %vm163
    %v165 = vsel %vm164, %v157, %v161
    %v166 = vand.u32 2147483647, %v156
    %vm167 = vcmp.eq.f32.partialorder %v166, 8.507059e+37
    %v168 = vand.u32 %v156, 2147483648
    %v169 = vor.u32 1.1754944e-38, %v168
    %v170 = vsel %vm167, %v169, %v165
    %v171 = vmul.f32 1.0, %v170
    %v172 = vtanh.pop %v152
    %v174 = vrot.slane %v117, 7
    %v176 = vmul.f32 %v171, %v174
    %178 = vrot.lane.b32.xlu0 %v172, 64
    %v179 = vpop.permute.xlu0 %178
    %v181 = vmul.f32 %v171, %v179
    %183 = vrot.lane.b32.xlu0 %v181, 32
    %v184 = vpop.permute.xlu0 %183
    %v186 = vadd.f32 %v176, %v184
    %v187 = vtanh.pop %v186
    %189 = vrot.lane.b32.xlu0 %v187, 64
    %v190 = vpop.permute.xlu0 %189
    %v192 = vmul.f32 %v171, %v190
    %v194 = vrot.slane %v192, 1
    %195 = vrot.lane.b32.xlu0 %v194, 32
    %v196 = vpop.permute.xlu0 %195
    %v197 = vsel %vm62, %v196, 0
    %199 = vmatpush.msra.mxu0 0.0
    %200 = vmatpush.msra.mxu0 0.0
    %201 = vmatpush.msra.mxu0 0.0
    %202 = vmatpush.msra.mxu0 0.0
    %203 = vmatpush.msra.mxu0 0.0
    %204 = vmatpush.msra.mxu0 0.0
    %205 = vmatpush.msra.mxu0 0.0
    %206 = vmatpush.msra.mxu0 0.0
    %207 = vmatpush.msra.mxu0 0.0
    %208 = vmatpush.msra.mxu0 0.0
    %209 = vmatpush.msra.mxu0 0.0
    %210 = vmatpush.msra.mxu0 0.0
    %211 = vmatpush.msra.mxu0 %v61
    %212 = vmatpush.msra.mxu0 %v60
    %213 = vmatpush.msra.mxu0 %v59
    %214 = vmatpush.msra.mxu0 %v58
    %215 = vmatmul.f32.gmra.mxu0 %v197
    %v216 = vpop.f32.mrf.mxu0
    %v217 = vadd.f32 0.0, %v216
    %218 = vdwg.mxu0
    %v220 = vrot.slane %v217, 6
    %v222 = vadd.f32 %v57, %v220
    %v223 = vxor.u32 %v222, 2147483648
    %v224 = vmul.f32 %v223, 1.442695
    %v225 = vpow.pop %v224
    %v226 = vadd.f32 %v225, 1.0
    %v227 = vrcp.pop %v226
    %v228 = vmul.f32 %v226, %v227
    %v229 = vsub.f32 1.0, %v228
    %v230 = vmul.f32 %v227, %v229
    %v231 = vadd.f32 %v227, %v230
    %vm232 = vweird.f32 %v226
    %vm233 = vweird.f32 %v227
    %vm234 = vmor %vm232, %vm233
    %v235 = vsel %vm234, %v227, %v231
    %v236 = vand.u32 2147483647, %v226
    %vm237 = vcmp.eq.f32.partialorder %v236, 8.507059e+37
    %v238 = vand.u32 %v226, 2147483648
    %v239 = vor.u32 1.1754944e-38, %v238
    %v240 = vsel %vm237, %v239, %v235
    %v241 = vmul.f32 1.0, %v240
    %v242 = vtanh.pop %v222
    %v244 = vrot.slane %v186, 7
    %v246 = vmul.f32 %v241, %v244
    %248 = vrot.lane.b32.xlu0 %v242, 64
    %v249 = vpop.permute.xlu0 %248
    %v251 = vmul.f32 %v241, %v249
    %253 = vrot.lane.b32.xlu0 %v251, 32
    %v254 = vpop.permute.xlu0 %253
    %v256 = vadd.f32 %v246, %v254
    %v257 = vtanh.pop %v256
    %259 = vrot.lane.b32.xlu0 %v257, 64
    %v260 = vpop.permute.xlu0 %259
    %v262 = vmul.f32 %v241, %v260
    %v264 = vrot.slane %v262, 2
    %265 = vrot.lane.b32.xlu0 %v264, 32
    %v266 = vpop.permute.xlu0 %265
    %v267 = vsel %vm62, %v266, 0
    %269 = vmatpush.msra.mxu0 0.0
    %270 = vmatpush.msra.mxu0 0.0
    %271 = vmatpush.msra.mxu0 0.0
    %272 = vmatpush.msra.mxu0 0.0
    %273 = vmatpush.msra.mxu0 0.0
    %274 = vmatpush.msra.mxu0 0.0
    %275 = vmatpush.msra.mxu0 0.0
    %276 = vmatpush.msra.mxu0 0.0
    %277 = vmatpush.msra.mxu0 0.0
    %278 = vmatpush.msra.mxu0 0.0
    %279 = vmatpush.msra.mxu0 0.0
    %280 = vmatpush.msra.mxu0 0.0
    %281 = vmatpush.msra.mxu0 %v61
    %282 = vmatpush.msra.mxu0 %v60
    %283 = vmatpush.msra.mxu0 %v59
    %284 = vmatpush.msra.mxu0 %v58
    %285 = vmatmul.f32.gmra.mxu0 %v267
    %v286 = vpop.f32.mrf.mxu0
    %v287 = vadd.f32 0.0, %v286
    %288 = vdwg.mxu0
    %v290 = vrot.slane %v287, 5
    %v292 = vadd.f32 %v57, %v290
    %v293 = vxor.u32 %v292, 2147483648
    %v294 = vmul.f32 %v293, 1.442695
    %v295 = vpow.pop %v294
    %v296 = vadd.f32 %v295, 1.0
    %v297 = vrcp.pop %v296
    %v298 = vmul.f32 %v296, %v297
    %v299 = vsub.f32 1.0, %v298
    %v300 = vmul.f32 %v297, %v299
    %v301 = vadd.f32 %v297, %v300
    %vm302 = vweird.f32 %v296
    %vm303 = vweird.f32 %v297
    %vm304 = vmor %vm302, %vm303
    %v305 = vsel %vm304, %v297, %v301
    %v306 = vand.u32 2147483647, %v296
    %vm307 = vcmp.eq.f32.partialorder %v306, 8.507059e+37
    %v308 = vand.u32 %v296, 2147483648
    %v309 = vor.u32 1.1754944e-38, %v308
    %v310 = vsel %vm307, %v309, %v305
    %v311 = vmul.f32 1.0, %v310
    %v312 = vtanh.pop %v292
    %v314 = vrot.slane %v256, 7
    %v316 = vmul.f32 %v311, %v314
    %318 = vrot.lane.b32.xlu0 %v312, 64
    %v319 = vpop.permute.xlu0 %318
    %v321 = vmul.f32 %v311, %v319
    %323 = vrot.lane.b32.xlu0 %v321, 32
    %v324 = vpop.permute.xlu0 %323
    %v326 = vadd.f32 %v316, %v324
    %v327 = vtanh.pop %v326
    %329 = vrot.lane.b32.xlu0 %v327, 64
    %v330 = vpop.permute.xlu0 %329
    %v332 = vmul.f32 %v311, %v330
    %v334 = vrot.slane %v332, 3
    %335 = vrot.lane.b32.xlu0 %v334, 32
    %v336 = vpop.permute.xlu0 %335
    %v337 = vsel %vm62, %v336, 0
    %339 = vmatpush.msra.mxu0 0.0
    %340 = vmatpush.msra.mxu0 0.0
    %341 = vmatpush.msra.mxu0 0.0
    %342 = vmatpush.msra.mxu0 0.0
    %343 = vmatpush.msra.mxu0 0.0
    %344 = vmatpush.msra.mxu0 0.0
    %345 = vmatpush.msra.mxu0 0.0
    %346 = vmatpush.msra.mxu0 0.0
    %347 = vmatpush.msra.mxu0 0.0
    %348 = vmatpush.msra.mxu0 0.0
    %349 = vmatpush.msra.mxu0 0.0
    %350 = vmatpush.msra.mxu0 0.0
    %351 = vmatpush.msra.mxu0 %v61
    %352 = vmatpush.msra.mxu0 %v60
    %353 = vmatpush.msra.mxu0 %v59
    %354 = vmatpush.msra.mxu0 %v58
    %355 = vmatmul.f32.gmra.mxu0 %v337
    %v356 = vpop.f32.mrf.mxu0
    %v357 = vadd.f32 0.0, %v356
    %358 = vdwg.mxu0
    %v360 = vrot.slane %v357, 4
    %v362 = vadd.f32 %v57, %v360
    %v363 = vxor.u32 %v362, 2147483648
    %v364 = vmul.f32 %v363, 1.442695
    %v365 = vpow.pop %v364
    %v366 = vadd.f32 %v365, 1.0
    %v367 = vrcp.pop %v366
    %v368 = vmul.f32 %v366, %v367
    %v369 = vsub.f32 1.0, %v368
    %v370 = vmul.f32 %v367, %v369
    %v371 = vadd.f32 %v367, %v370
    %vm372 = vweird.f32 %v366
    %vm373 = vweird.f32 %v367
    %vm374 = vmor %vm372, %vm373
    %v375 = vsel %vm374, %v367, %v371
    %v376 = vand.u32 2147483647, %v366
    %vm377 = vcmp.eq.f32.partialorder %v376, 8.507059e+37
    %v378 = vand.u32 %v366, 2147483648
    %v379 = vor.u32 1.1754944e-38, %v378
    %v380 = vsel %vm377, %v379, %v375
    %v381 = vmul.f32 1.0, %v380
    %v382 = vtanh.pop %v362
    %v384 = vrot.slane %v326, 7
    %v386 = vmul.f32 %v381, %v384
    %388 = vrot.lane.b32.xlu0 %v382, 64
    %v389 = vpop.permute.xlu0 %388
    %v391 = vmul.f32 %v381, %v389
    %393 = vrot.lane.b32.xlu0 %v391, 32
    %v394 = vpop.permute.xlu0 %393
    %v396 = vadd.f32 %v386, %v394
    %v397 = vtanh.pop %v396
    %399 = vrot.lane.b32.xlu0 %v397, 64
    %v400 = vpop.permute.xlu0 %399
    %v402 = vmul.f32 %v381, %v400
    %v404 = vrot.slane %v402, 4
    %405 = vrot.lane.b32.xlu0 %v404, 32
    %v406 = vpop.permute.xlu0 %405
    %v407 = vsel %vm62, %v406, 0
    %409 = vmatpush.msra.mxu0 0.0
    %410 = vmatpush.msra.mxu0 0.0
    %411 = vmatpush.msra.mxu0 0.0
    %412 = vmatpush.msra.mxu0 0.0
    %413 = vmatpush.msra.mxu0 0.0
    %414 = vmatpush.msra.mxu0 0.0
    %415 = vmatpush.msra.mxu0 0.0
    %416 = vmatpush.msra.mxu0 0.0
    %417 = vmatpush.msra.mxu0 0.0
    %418 = vmatpush.msra.mxu0 0.0
    %419 = vmatpush.msra.mxu0 0.0
    %420 = vmatpush.msra.mxu0 0.0
    %421 = vmatpush.msra.mxu0 %v61
    %422 = vmatpush.msra.mxu0 %v60
    %423 = vmatpush.msra.mxu0 %v59
    %424 = vmatpush.msra.mxu0 %v58
    %425 = vmatmul.f32.gmra.mxu0 %v407
    %v426 = vpop.f32.mrf.mxu0
    %v427 = vadd.f32 0.0, %v426
    %428 = vdwg.mxu0
    %v430 = vrot.slane %v427, 3
    %v432 = vadd.f32 %v57, %v430
    %v433 = vxor.u32 %v432, 2147483648
    %v434 = vmul.f32 %v433, 1.442695
    %v435 = vpow.pop %v434
    %v436 = vadd.f32 %v435, 1.0
    %v437 = vrcp.pop %v436
    %v438 = vmul.f32 %v436, %v437
    %v439 = vsub.f32 1.0, %v438
    %v440 = vmul.f32 %v437, %v439
    %v441 = vadd.f32 %v437, %v440
    %vm442 = vweird.f32 %v436
    %vm443 = vweird.f32 %v437
    %vm444 = vmor %vm442, %vm443
    %v445 = vsel %vm444, %v437, %v441
    %v446 = vand.u32 2147483647, %v436
    %vm447 = vcmp.eq.f32.partialorder %v446, 8.507059e+37
    %v448 = vand.u32 %v436, 2147483648
    %v449 = vor.u32 1.1754944e-38, %v448
    %v450 = vsel %vm447, %v449, %v445
    %v451 = vmul.f32 1.0, %v450
    %v452 = vtanh.pop %v432
    %v454 = vrot.slane %v396, 7
    %v456 = vmul.f32 %v451, %v454
    %458 = vrot.lane.b32.xlu0 %v452, 64
    %v459 = vpop.permute.xlu0 %458
    %v461 = vmul.f32 %v451, %v459
    %463 = vrot.lane.b32.xlu0 %v461, 32
    %v464 = vpop.permute.xlu0 %463
    %v466 = vadd.f32 %v456, %v464
    %v467 = vtanh.pop %v466
    %469 = vrot.lane.b32.xlu0 %v467, 64
    %v470 = vpop.permute.xlu0 %469
    %v472 = vmul.f32 %v451, %v470
    %v474 = vrot.slane %v472, 5
    %475 = vrot.lane.b32.xlu0 %v474, 32
    %v476 = vpop.permute.xlu0 %475
    %v477 = vsel %vm62, %v476, 0
    %479 = vmatpush.msra.mxu0 0.0
    %480 = vmatpush.msra.mxu0 0.0
    %481 = vmatpush.msra.mxu0 0.0
    %482 = vmatpush.msra.mxu0 0.0
    %483 = vmatpush.msra.mxu0 0.0
    %484 = vmatpush.msra.mxu0 0.0
    %485 = vmatpush.msra.mxu0 0.0
    %486 = vmatpush.msra.mxu0 0.0
    %487 = vmatpush.msra.mxu0 0.0
    %488 = vmatpush.msra.mxu0 0.0
    %489 = vmatpush.msra.mxu0 0.0
    %490 = vmatpush.msra.mxu0 0.0
    %491 = vmatpush.msra.mxu0 %v61
    %492 = vmatpush.msra.mxu0 %v60
    %493 = vmatpush.msra.mxu0 %v59
    %494 = vmatpush.msra.mxu0 %v58
    %495 = vmatmul.f32.gmra.mxu0 %v477
    %v496 = vpop.f32.mrf.mxu0
    %v497 = vadd.f32 0.0, %v496
    %498 = vdwg.mxu0
    %v500 = vrot.slane %v497, 2
    %v502 = vadd.f32 %v57, %v500
    %v503 = vxor.u32 %v502, 2147483648
    %v504 = vmul.f32 %v503, 1.442695
    %v505 = vpow.pop %v504
    %v506 = vadd.f32 %v505, 1.0
    %v507 = vrcp.pop %v506
    %v508 = vmul.f32 %v506, %v507
    %v509 = vsub.f32 1.0, %v508
    %v510 = vmul.f32 %v507, %v509
    %v511 = vadd.f32 %v507, %v510
    %vm512 = vweird.f32 %v506
    %vm513 = vweird.f32 %v507
    %vm514 = vmor %vm512, %vm513
    %v515 = vsel %vm514, %v507, %v511
    %v516 = vand.u32 2147483647, %v506
    %vm517 = vcmp.eq.f32.partialorder %v516, 8.507059e+37
    %v518 = vand.u32 %v506, 2147483648
    %v519 = vor.u32 1.1754944e-38, %v518
    %v520 = vsel %vm517, %v519, %v515
    %v521 = vmul.f32 1.0, %v520
    %v522 = vtanh.pop %v502
    %v524 = vrot.slane %v466, 7
    %v526 = vmul.f32 %v521, %v524
    %528 = vrot.lane.b32.xlu0 %v522, 64
    %v529 = vpop.permute.xlu0 %528
    %v531 = vmul.f32 %v521, %v529
    %533 = vrot.lane.b32.xlu0 %v531, 32
    %v534 = vpop.permute.xlu0 %533
    %v536 = vadd.f32 %v526, %v534
    %v537 = vtanh.pop %v536
    %539 = vrot.lane.b32.xlu0 %v537, 64
    %v540 = vpop.permute.xlu0 %539
    %v542 = vmul.f32 %v521, %v540
    %v544 = vrot.slane %v542, 6
    %545 = vrot.lane.b32.xlu0 %v544, 32
    %v546 = vpop.permute.xlu0 %545
    %v547 = vsel %vm62, %v546, 0
    %549 = vmatpush.msra.mxu0 0.0
    %550 = vmatpush.msra.mxu0 0.0
    %551 = vmatpush.msra.mxu0 0.0
    %552 = vmatpush.msra.mxu0 0.0
    %553 = vmatpush.msra.mxu0 0.0
    %554 = vmatpush.msra.mxu0 0.0
    %555 = vmatpush.msra.mxu0 0.0
    %556 = vmatpush.msra.mxu0 0.0
    %557 = vmatpush.msra.mxu0 0.0
    %558 = vmatpush.msra.mxu0 0.0
    %559 = vmatpush.msra.mxu0 0.0
    %560 = vmatpush.msra.mxu0 0.0
    %561 = vmatpush.msra.mxu0 %v61
    %562 = vmatpush.msra.mxu0 %v60
    %563 = vmatpush.msra.mxu0 %v59
    %564 = vmatpush.msra.mxu0 %v58
    %565 = vmatmul.f32.gmra.mxu0 %v547
    %v566 = vpop.f32.mrf.mxu0
    %v567 = vadd.f32 0.0, %v566
    %568 = vdwg.mxu0
    %v570 = vrot.slane %v567, 1
    %v572 = vadd.f32 %v57, %v570
    %v573 = vxor.u32 %v572, 2147483648
    %v574 = vmul.f32 %v573, 1.442695
    %v575 = vpow.pop %v574
    %v576 = vadd.f32 %v575, 1.0
    %v577 = vrcp.pop %v576
    %v578 = vmul.f32 %v576, %v577
    %v579 = vsub.f32 1.0, %v578
    %v580 = vmul.f32 %v577, %v579
    %v581 = vadd.f32 %v577, %v580
    %vm582 = vweird.f32 %v576
    %vm583 = vweird.f32 %v577
    %vm584 = vmor %vm582, %vm583
    %v585 = vsel %vm584, %v577, %v581
    %v586 = vand.u32 2147483647, %v576
    %vm587 = vcmp.eq.f32.partialorder %v586, 8.507059e+37
    %v588 = vand.u32 %v576, 2147483648
    %v589 = vor.u32 1.1754944e-38, %v588
    %v590 = vsel %vm587, %v589, %v585
    %v591 = vmul.f32 1.0, %v590
    %v592 = vtanh.pop %v572
    %v594 = vrot.slane %v536, 7
    %v596 = vmul.f32 %v591, %v594
    %598 = vrot.lane.b32.xlu0 %v592, 64
    %v599 = vpop.permute.xlu0 %598
    %v601 = vmul.f32 %v591, %v599
    %603 = vrot.lane.b32.xlu0 %v601, 32
    %v604 = vpop.permute.xlu0 %603
    %v606 = vadd.f32 %v596, %v604
    %v607 = vtanh.pop %v606
    %609 = vrot.lane.b32.xlu0 %v607, 64
    %v610 = vpop.permute.xlu0 %609
    %v612 = vmul.f32 %v591, %v610
    %v613 = vld [vmem:[%s4] sm:$0x1]
    %v615 = vperm.slane %v613, 0
    %616 = vrot.lane.b32.xlu0 %v615, 96
    %v617 = vpop.permute.xlu0 %616
    %v619 = vmul.f32 %v612, %v617
    %621 = vrot.lane.b32.xlu0 %v619, 32
    %v622 = vpop.permute.xlu0 %621
    %vm624 = vcmask 261127
    %v625 = vsel %vm624, %v622, 0.0
    %626 = vadd.xlane.f32.xlu0 %v625
    %v627 = vpop.xlane.xlu0 %626
    %v628 = vld [vmem:[#allocation2] sm:$0x1]
    %v630 = vperm.slane %v628, 0
    %v632 = vadd.f32 %v627, %v630
    %vm633 = vcmask 7175
    %634 = vst.msk [vmem:[#allocation6 - $0x7] sm:$0x80] %vm633, %v632
    // Predicated region
    $region30: #{tpu_custom_call.1} parent=1 // pred_check
      _
    $region31: #{tpu_custom_call.1} parent=1 // pred_check_branch
      %636 = sbr.rel (0) target = $region33
    $region32: #{tpu_custom_call.1} parent=1 // pred_region
      %638 = vsyncadd [#allocation5], 0
      %s640 = sshll.u32 [#allocation6], 4
      %s641 = int_to_ptr.vmem [resolvable:$true] %s640
      %s642 = sshll.u32 %s6, 4
      %s643 = int_to_ptr.hbm [resolvable:$true] %s642
      %645 = dma.vmem_to_hbm [thread:$0]  %s641, 16, %s643, [#allocation5]
    $region33: #{tpu_custom_call.1} parent=1 // pred_fallthru
      _
    // Predicated region
    $region34: #{tpu_custom_call.1} parent=1 // pred_check
      _
    $region35: #{tpu_custom_call.1} parent=1 // pred_check_branch
      %647 = sbr.rel (0) target = $region37
    $region36: #{tpu_custom_call.1} parent=1 // pred_region
      %649 = dma.done [#allocation5], 16
    $region37: #{tpu_custom_call.1} parent=1 // pred_fallthru
      _
    %650 = vsyncpa [#allocation4], 1
    %651 = vsyncpa [#allocation5], 1

</llo_original>
